<compile_context>
chip_gen: v7x
topology: tpu7x:2x2x1
jax: 0.10.0
libtpu: 0.0.40
codegen_flags: <defaults>
</compile_context>

<pallas_src>
import functools

import jax
import jax.numpy as jnp
from jax.experimental import pallas as pl
from jax.experimental.pallas import tpu as pltpu

_LANES = 128     # vreg lane width
_SUBLANES = 8    # f32 sublanes per vreg


def _mod(x, m):
    """x % m for an int32 vector and a static positive python int m."""
    if m & (m - 1) == 0:                       # power of two -> bitwise AND (VPU)
        return jnp.bitwise_and(x, m - 1)
    # General modulus via f32 divide + floor (exact for |x| < 2**24).
    q = jnp.floor(x.astype(jnp.float32) / jnp.float32(m)).astype(jnp.int32)
    return x - q * m


def _tv_kernel(x_ref, o_ref, *, w, hw, n):
    # x_ref: (rows, 128) lane-dense row-major flattening of the (C, H, W)
    #        patch, zero-padded up to rows*128 elements.
    # o_ref: (1, 1) scalar result in SMEM.
    x = x_ref[...].astype(jnp.float32)
    rows, lanes = x.shape
    eps = jnp.float32(1e-6)

    row = jax.lax.broadcasted_iota(jnp.int32, (rows, lanes), 0)
    lane = jax.lax.broadcasted_iota(jnp.int32, (rows, lanes), 1)
    idx = row * lanes + lane                   # flattened element index

    def shifted_by(s):
        # result[i] == flat[(i + s) % (rows*lanes)] in the row-major flattening.
        # The wrap-around positions (i >= rows*lanes - s) are masked out below.
        q, rem = divmod(s, lanes)
        y = x
        if rem:
            y = pltpu.roll(y, shift=lanes - rem, axis=1)        # lane shift by -rem
        if q:
            y = pltpu.roll(y, shift=(rows - q) % rows, axis=0)  # row shift by -q
        if rem == 0:
            return y
        y_next = pltpu.roll(y, shift=rows - 1, axis=0)          # next row's copy
        return jnp.where(lane < lanes - rem, y, y_next)

    # Horizontal term: |x[c, h, w+1] - x[c, h, w] + eps|, valid where w < W-1.
    dw = jnp.abs(shifted_by(1) - x + eps)
    mask_w = jnp.logical_and(idx < n, _mod(idx, w) < (w - 1))

    # Vertical term: |x[c, h+1, w] - x[c, h, w] + eps|, valid where h < H-1
    # (this also kills channel-seam wraps and the padding tail).
    dh = jnp.abs(shifted_by(w) - x + eps)
    mask_h = jnp.logical_and(idx < n, _mod(idx, hw) < (hw - w))

    zero = jnp.float32(0.0)
    total = jnp.sum(jnp.where(mask_w, dw, zero) + jnp.where(mask_h, dh, zero))
    o_ref[0, 0] = total / jnp.float32(n)


def total_variation(adv_patch):
    """Pallas equivalent of TotalVariation.forward. Returns a scalar."""
    c, h, w = adv_patch.shape
    n = c * h * w
    tile = _SUBLANES * _LANES
    n_pad = pl.cdiv(n, tile) * tile

    # Lane-dense reshape (pure layout plumbing in the wrapper). Keep the input
    # dtype: the f32 upcast happens inside the kernel.
    flat = adv_patch.reshape(n)
    if n_pad != n:
        flat = jnp.pad(flat, (0, n_pad - n))
    x2d = flat.reshape(n_pad // _LANES, _LANES)

    kernel = functools.partial(_tv_kernel, w=w, hw=h * w, n=n)
    out = pl.pallas_call(
        kernel,
        out_shape=jax.ShapeDtypeStruct((1, 1), jnp.float32),
        in_specs=[pl.BlockSpec(memory_space=pltpu.VMEM)],
        out_specs=pl.BlockSpec(memory_space=pltpu.SMEM),
    )(x2d)
    return out[0, 0]


def _total_variation_ref(adv_patch):
    x = adv_patch.astype(jnp.float32)
    t1 = jnp.sum(jnp.abs(x[:, :, 1:] - x[:, :, :-1] + 1e-6))
    t2 = jnp.sum(jnp.abs(x[:, 1:, :] - x[:, :-1, :] + 1e-6))
    return (t1 + t2) / x.size


if __name__ == "__main__":
    key = jax.random.PRNGKey(0)
    # adversarial patch: (C, H, W) = (3, 16, 16), values in [0, 1]
    adv_patch = jax.random.uniform(key, (3, 16, 16), dtype=jnp.float32)

    tv = total_variation(adv_patch)
    tv = jax.block_until_ready(tv)

    ref = _total_variation_ref(adv_patch)
    assert jnp.allclose(tv, ref, rtol=5e-5, atol=1e-6), (tv, ref)
    print("KERNEL_OK")
</pallas_src>

<mosaic_0001>
module attributes {stable_mosaic.version = 11 : i64} {
  func.func @_tv_kernel(%arg0: memref<8x128xf32, #tpu.memory_space<vmem>>, %arg1: memref<1x1xf32, #tpu.memory_space<smem>>) attributes {dimension_semantics = [], scalar_prefetch = 0 : i64, scratch_operands = 0 : i64, tpu.core_type = #tpu.core_type<tc>} {
    %c0 = arith.constant 0 : index
    %c0_0 = arith.constant 0 : index
    %0 = vector.load %arg0[%c0, %c0_0] : memref<8x128xf32, #tpu.memory_space<vmem>>, vector<8x128xf32>
    %1 = tpu.iota {dimensions = array<i32: 0>} : vector<8x128xi32>
    %2 = tpu.iota {dimensions = array<i32: 1>} : vector<8x128xi32>
    %c128_i32 = arith.constant 128 : i32
    %3 = vector.broadcast %c128_i32 : i32 to vector<8x128xi32>
    %4 = arith.muli %1, %3 : vector<8x128xi32>
    %5 = arith.addi %4, %2 : vector<8x128xi32>
    %c127_i32 = arith.constant 127 : i32
    %6 = tpu.dynamic_rotate %0 by %c127_i32 dim 1 : vector<8x128xf32>, i32 -> vector<8x128xf32>
    %c7_i32 = arith.constant 7 : i32
    %7 = tpu.dynamic_rotate %6 by %c7_i32 dim 0 : vector<8x128xf32>, i32 -> vector<8x128xf32>
    %c127_i32_1 = arith.constant 127 : i32
    %8 = vector.broadcast %c127_i32_1 : i32 to vector<8x128xi32>
    %9 = arith.cmpi slt, %2, %8 : vector<8x128xi32>
    %10 = arith.select %9, %6, %7 : vector<8x128xi1>, vector<8x128xf32>
    %11 = arith.subf %10, %0 : vector<8x128xf32>
    %cst = arith.constant 9.99999997E-7 : f32
    %12 = vector.broadcast %cst : f32 to vector<8x128xf32>
    %13 = arith.addf %11, %12 : vector<8x128xf32>
    %14 = math.absf %13 : vector<8x128xf32>
    %c768_i32 = arith.constant 768 : i32
    %15 = vector.broadcast %c768_i32 : i32 to vector<8x128xi32>
    %16 = arith.cmpi slt, %5, %15 : vector<8x128xi32>
    %c15_i32 = arith.constant 15 : i32
    %17 = vector.broadcast %c15_i32 : i32 to vector<8x128xi32>
    %18 = arith.andi %5, %17 : vector<8x128xi32>
    %c15_i32_2 = arith.constant 15 : i32
    %19 = vector.broadcast %c15_i32_2 : i32 to vector<8x128xi32>
    %20 = arith.cmpi slt, %18, %19 : vector<8x128xi32>
    %21 = arith.andi %16, %20 : vector<8x128xi1>
    %c112_i32 = arith.constant 112 : i32
    %22 = tpu.dynamic_rotate %0 by %c112_i32 dim 1 : vector<8x128xf32>, i32 -> vector<8x128xf32>
    %c7_i32_3 = arith.constant 7 : i32
    %23 = tpu.dynamic_rotate %22 by %c7_i32_3 dim 0 : vector<8x128xf32>, i32 -> vector<8x128xf32>
    %c112_i32_4 = arith.constant 112 : i32
    %24 = vector.broadcast %c112_i32_4 : i32 to vector<8x128xi32>
    %25 = arith.cmpi slt, %2, %24 : vector<8x128xi32>
    %26 = arith.select %25, %22, %23 : vector<8x128xi1>, vector<8x128xf32>
    %27 = arith.subf %26, %0 : vector<8x128xf32>
    %cst_5 = arith.constant 9.99999997E-7 : f32
    %28 = vector.broadcast %cst_5 : f32 to vector<8x128xf32>
    %29 = arith.addf %27, %28 : vector<8x128xf32>
    %30 = math.absf %29 : vector<8x128xf32>
    %c768_i32_6 = arith.constant 768 : i32
    %31 = vector.broadcast %c768_i32_6 : i32 to vector<8x128xi32>
    %32 = arith.cmpi slt, %5, %31 : vector<8x128xi32>
    %c255_i32 = arith.constant 255 : i32
    %33 = vector.broadcast %c255_i32 : i32 to vector<8x128xi32>
    %34 = arith.andi %5, %33 : vector<8x128xi32>
    %c240_i32 = arith.constant 240 : i32
    %35 = vector.broadcast %c240_i32 : i32 to vector<8x128xi32>
    %36 = arith.cmpi slt, %34, %35 : vector<8x128xi32>
    %37 = arith.andi %32, %36 : vector<8x128xi1>
    %cst_7 = arith.constant 0.000000e+00 : f32
    %38 = vector.broadcast %cst_7 : f32 to vector<8x128xf32>
    %39 = arith.select %21, %14, %38 : vector<8x128xi1>, vector<8x128xf32>
    %cst_8 = arith.constant 0.000000e+00 : f32
    %40 = vector.broadcast %cst_8 : f32 to vector<8x128xf32>
    %41 = arith.select %37, %30, %40 : vector<8x128xi1>, vector<8x128xf32>
    %42 = arith.addf %39, %41 : vector<8x128xf32>
    %43 = vector.shape_cast %42 : vector<8x128xf32> to vector<1x8x128xf32>
    %cst_9 = arith.constant dense<0.000000e+00> : vector<1xf32>
    %44 = vector.multi_reduction <add>, %43, %cst_9 [1, 2] : vector<1x8x128xf32> to vector<1xf32>
    %45 = vector.shape_cast %44 : vector<1xf32> to vector<1x1x1xf32>
    %46 = vector.extract %45[0, 0, 0] : f32 from vector<1x1x1xf32>
    %cst_10 = arith.constant 7.680000e+02 : f32
    %47 = arith.divf %46, %cst_10 : f32
    %c0_11 = arith.constant 0 : index
    %c0_12 = arith.constant 0 : index
    %48 = memref.load %arg1[%c0_11, %c0_12] : memref<1x1xf32, #tpu.memory_space<smem>>
    memref.store %47, %arg1[%c0_11, %c0_12] : memref<1x1xf32, #tpu.memory_space<smem>>
    return
  }
}

</mosaic_0001>

<llo_original>
// kernel: tpu_custom_call.1
$region0: #{tpu_custom_call.1}
  #allocation0 [shape = 'u32[]', space=smem, size = 0x4, offset = 0x4, fixed_abs, tag = 'smem constant byte address 0x4 - core index']
  #allocation1 [shape = 'u32[144,128]{1,0:T(1,128)}', space=vmem, size = 0x12000, scoped, tag = 'internal scratch']
  %s0 = inlined_call_operand.hbm [shape: f32[8,128], index: 0, kind: input, shape index: {}]
  %s1 = inlined_call_operand.hbm [shape: f32[1,1], index: 1, kind: output, shape index: {}]
  %s2 = sld [smem:[#allocation0]]
  $region18: #{tpu_custom_call.1} parent=0
    _
  %s4 = ssub.s32 1, %s2
  %s5 = scalar_select 0, %s4, %s2
  $region1: #{tpu_custom_call.1} parent=0
    #allocation2 [shape = 'u8[4096]{0}', space=vmem, size = 0x1000, scoped, tag = 'input window, operand 0, single buffered']
    #allocation3 [shape = 's32[1]{0}', space=sflag, size = 0x4, scoped, tag = 'scoped memory for tpu_custom_call.1']
    #allocation4 [shape = 's32[1]{0}', space=sflag, size = 0x4, scoped, tag = 'scoped memory for tpu_custom_call.1']
    #allocation5 [shape = 'u8[512]{0}', space=smem, size = 0x200, scoped, tag = 'output window, operand 0, single buffered']
    %6 = vsyncpa [#allocation3], 0
    %7 = vsyncpa [#allocation4], 0
    // Predicated region
    $region2: #{tpu_custom_call.1} parent=1 // pred_check
      _
    $region3: #{tpu_custom_call.1} parent=1 // pred_check_branch
      %9 = sbr.rel (0) target = $region5
    $region4: #{tpu_custom_call.1} parent=1 // pred_region
      %s11 = ssub.s32 128, 128
      %12 = vsyncadd [#allocation3], %s11
      %s14 = sshll.u32 [#allocation2], 4
      %s15 = int_to_ptr.vmem [resolvable:$true] %s14
      %17 = dma.hbm_to_vmem [thread:$0]  %s0, 128, %s15, [#allocation3]
    $region5: #{tpu_custom_call.1} parent=1 // pred_fallthru
      _
    // Predicated region
    $region6: #{tpu_custom_call.1} parent=1 // pred_check
      _
    $region7: #{tpu_custom_call.1} parent=1 // pred_check_branch
      %19 = sbr.rel (0) target = $region9
    $region8: #{tpu_custom_call.1} parent=1 // pred_region
      %20 = dma.done [#allocation3], 128
    $region9: #{tpu_custom_call.1} parent=1 // pred_fallthru
      _
    %v21 = vld [vmem:[#allocation2] sm:$0xff]
    %v22 = vlaneseq
    %v23 = vshrl.u32 %v22, 7
    %v24 = vlaneseq
    %v25 = vand.u32 %v24, 127
    %v26 = vmul.u32 %v23, 128
    %v27 = vadd.s32 %v26, %v25
    %28 = vrot.lane.b32.xlu0 %v21, 127
    %v29 = vpop.permute.xlu0 %28
    %v30 = vrot.slane %v29, 1
    %vm31 = vcmp.lt.s32.totalorder %v25, 127
    %v32 = vsel %vm31, %v29, %v30
    %v33 = vsub.f32 %v32, %v21
    %v34 = vadd.f32 %v33, 1e-06
    %v35 = vand.u32 2147483647, %v34
    %vm36 = vcmp.lt.s32.totalorder %v27, 768
    %v37 = vand.u32 %v27, 15
    %vm38 = vcmp.lt.s32.totalorder %v37, 15
    %vm39 = vmand %vm36, %vm38
    %40 = vrot.lane.b32.xlu0 %v21, 112
    %v41 = vpop.permute.xlu0 %40
    %v42 = vrot.slane %v41, 1
    %vm43 = vcmp.lt.s32.totalorder %v25, 112
    %v44 = vsel %vm43, %v41, %v42
    %v45 = vsub.f32 %v44, %v21
    %v46 = vadd.f32 %v45, 1e-06
    %v47 = vand.u32 2147483647, %v46
    %v48 = vand.u32 %v27, 255
    %vm49 = vcmp.lt.s32.totalorder %v48, 240
    %vm50 = vmand %vm36, %vm49
    %v51 = vsel %vm39, %v35, 0.0
    %v52 = vsel %vm50, %v47, 0.0
    %v53 = vadd.f32 %v51, %v52
    %54 = vadd.xlane.f32.xlu0 %v53
    %v55 = vpop.xlane.xlu0 %54
    %v56 = vrot.slane %v55, 4
    %v57 = vadd.f32 %v55, %v56
    %v58 = vrot.slane %v57, 2
    %v59 = vadd.f32 %v57, %v58
    %v60 = vrot.slane %v59, 1
    %v61 = vadd.f32 %v59, %v60
    %s62 = vtos %v61
    %v63 = vrcp.pop 768.0
    %s64 = vtos %v63
    %s65 = smul.f32 %s62, %s64
    %s66 = scalar_lea.smem [#allocation5], 0
    %67 = sst [smem:[%s66]] %s65
    // Predicated region
    $region10: #{tpu_custom_call.1} parent=1 // pred_check
      _
    $region11: #{tpu_custom_call.1} parent=1 // pred_check_branch
      %69 = sbr.rel (0) target = $region13
    $region12: #{tpu_custom_call.1} parent=1 // pred_region
      %s71 = ssub.s32 16, 16
      %72 = vsyncadd [#allocation4], %s71
      %75 = dma.smem_to_hbm [#allocation5], 16, %s1, [#allocation4]
    $region13: #{tpu_custom_call.1} parent=1 // pred_fallthru
      _
    // Predicated region
    $region14: #{tpu_custom_call.1} parent=1 // pred_check
      _
    $region15: #{tpu_custom_call.1} parent=1 // pred_check_branch
      %77 = sbr.rel (0) target = $region17
    $region16: #{tpu_custom_call.1} parent=1 // pred_region
      %78 = dma.done [#allocation4], 16
    $region17: #{tpu_custom_call.1} parent=1 // pred_fallthru
      _
    %79 = sfence
    %80 = vsyncpa [#allocation3], 1
    %81 = vsyncpa [#allocation4], 1

</llo_original>
